<compile_context>
chip_gen: v6e
topology: v6e:2x2x1
jax: 0.10.0
libtpu: 0.0.40
codegen_flags: <defaults>
</compile_context>

<pallas_src>
import functools

import jax
import jax.numpy as jnp
from jax.experimental import pallas as pl
from jax.experimental.pallas import tpu as pltpu

_SQRT_HALF = 0.7071067811865476
_GELU_C = 0.7978845608028654          # sqrt(2/pi)


def _round_up(v, m):
  return -(-v // m) * m


# ----------------------------- in-kernel math --------------------------------
def _sigmoid(z):
  return 1.0 / (1.0 + jnp.exp(-z))


def _silu(z):                          # nn.SiLU
  return z * _sigmoid(z)


def _gelu(z):
  # tanh-form GELU (single EUP tanh); |err| vs exact erf GELU < 3e-3.
  return 0.5 * z * (1.0 + jnp.tanh(_GELU_C * (z + 0.044715 * z * z * z)))


def _softplus(z):                      # nn.Softplus(beta=1, threshold=20)
  # stable form: max(z,0) + log(1 + exp(-|z|)); matches the threshold branch.
  return jnp.maximum(z, 0.0) + jnp.log(1.0 + jnp.exp(-jnp.abs(z)))


# --------------------------------- kernel ------------------------------------
def _multitask_kernel(x_ref, wa_ref, wb_ref, v_ref, out_ref, *,
                      H0, H1, T, wl, vl):
  """x_ref: (Bt, D) bf16; wa_ref: 256-lane bf16 slab (fused blocks);
  wb_ref: 128-lane bf16 slab (narrow blocks + final projections);
  v_ref: f32 bias/BN vector slab; out_ref: (Bt, 128) f32 lane-dense slab."""
  f32 = jnp.float32
  bf16 = jnp.bfloat16
  TE = T * 64

  def W(name):                          # static slab slice (load on use)
    slab, r, k, n = wl[name]
    ref = wa_ref if slab == 'a' else wb_ref
    return ref[r:r + k, 0:n]

  def V(name):                          # (1, n) f32 row of the vector slab
    r, n = vl[name]
    return v_ref[r:r + 1, 0:n]

  def mm(a, name):                      # bf16 x bf16 MXU matmul, f32 accumulate
    return jnp.dot(a.astype(bf16), W(name), preferred_element_type=f32)

  xb = x_ref[...]                       # (Bt, D) bf16 (cast wrapper-side)

  # ---- stage 1: one fused matmul for everything consuming x:
  #      lanes [0:H0)=trunk1, [H0:H0+64)=cathode1, [H0+64:H0+128)=total-head x.
  rx = mm(xb, 'wx') + V('bx')
  h1 = _silu(rx[:, 0:H0]) * V('s1') + V('o1')            # trunk block 1 (+BN)
  cp = _gelu(rx[:, H0:H0 + 64]) * V('sc1') + V('oc1')    # cathode hidden (+BN)
  ztx = rx[:, H0 + 64:H0 + 128]                          # x @ wt1_x (+bt1)

  # ---- stage 2: second-layer projections (independent branches).
  b2g = V('b2g')                                         # [b2 | bc2 | bt2]
  h = _silu(mm(h1, 'w2') + b2g[:, 0:H1]) * V('s2') + V('o2')   # trunk block 2
  cf = mm(cp, 'wc2') + b2g[:, H1:H1 + 32]                      # cathode_feat

  # ---- stage 3: everything consuming cathode_feat / trunk output.
  #      rca lanes: [0:TE)=attention logits (per-task gate pre-expanded over
  #      its 64 lanes), [TE:TE+64)=cfeat @ wt1_c.
  rca = mm(cf, 'wca') + V('bca')
  attn = _sigmoid(rca[:, 0:TE])
  ztc = rca[:, TE:TE + 64]
  rcb = mm(cf, 'wcb')                                    # cfeat @ we1_c (fused)
  #      rh lanes: [0:TE)=h @ we1_h (+folded BN bias), [TE:TE+64)=h @ wt1_h.
  rh = mm(h, 'wh') + V('bh')
  ze = _gelu(rh[:, 0:TE] + attn * rcb[:, 0:TE])          # fused emission hidden
  zth = rh[:, TE:TE + 64]

  # ---- stage 4: total-head tail (BN folded into wt1/wt2 + biases).
  zt1 = _gelu(ztx + zth + ztc)
  zt2 = _gelu(mm(zt1, 'wt2') + b2g[:, H1 + 32:H1 + 64])

  # ---- stage 5: merged final projection, single lane-dense store:
  #      lanes 0..T-1 = per-task emissions, lane T = total.
  final = mm(ze, 'wfe') + mm(zt2, 'wft') + V('bfin')
  out_ref[...] = _softplus(final)


# ------------------------------ parameter init --------------------------------
def init_params(key, input_size, num_tasks, hidden_dims, num_cathode):
  H0, H1 = hidden_dims
  keys = iter(jax.random.split(key, 64))

  def linear(din, dout):
    w = 0.1 * jax.random.normal(next(keys), (din, dout), jnp.float32)
    b = 0.01 * jax.random.normal(next(keys), (dout,), jnp.float32)
    return w, b

  def bn(d):  # (gamma, beta, running_mean, running_var)
    gamma = 1.0 + 0.1 * jax.random.normal(next(keys), (d,), jnp.float32)
    beta = 0.1 * jax.random.normal(next(keys), (d,), jnp.float32)
    mean = 0.1 * jax.random.normal(next(keys), (d,), jnp.float32)
    var = 1.0 + 0.5 * jax.random.uniform(next(keys), (d,), jnp.float32)
    return gamma, beta, mean, var

  p = {}
  p['w1'], p['b1'] = linear(input_size, H0); p['bn1'] = bn(H0)
  p['w2'], p['b2'] = linear(H0, H1); p['bn2'] = bn(H1)
  p['wc1'], p['bc1'] = linear(num_cathode, 64); p['bnc'] = bn(64)
  p['wc2'], p['bc2'] = linear(64, 32)
  p['wa'], p['ba'] = linear(32, num_tasks)
  we1, be1, bg, bb, bm, bv, we2, be2 = [], [], [], [], [], [], [], []
  for _ in range(num_tasks):
    w, b = linear(H1 + 32, 64); we1.append(w); be1.append(b)
    g, bt, m, v = bn(64); bg.append(g); bb.append(bt); bm.append(m); bv.append(v)
    w, b = linear(64, 1); we2.append(w); be2.append(b)
  p['we1'] = jnp.stack(we1); p['be1'] = jnp.stack(be1)
  p['bne'] = (jnp.stack(bg), jnp.stack(bb), jnp.stack(bm), jnp.stack(bv))
  p['we2'] = jnp.stack(we2); p['be2'] = jnp.stack(be2)
  p['wt1'], p['bt1'] = linear(H1 + input_size + 32, 64); p['bnt1'] = bn(64)
  p['wt2'], p['bt2'] = linear(64, 32); p['bnt2'] = bn(32)
  p['wt3'], p['bt3'] = linear(32, 1)
  return p


# --------------------- one-time (model-load) parameter packing ----------------
def pack_params(params, cathode_indices, input_size):
  """Fold BatchNorm (eval), fuse shared-LHS matmuls along lanes, fold the
  cathode-column gather into weight rows, and pack everything into two dense
  bf16 weight slabs + one f32 vector slab.  Runs ONCE at model-load time."""
  eps = 1e-5
  f32 = jnp.float32
  D = int(input_size)
  H0 = int(params['w1'].shape[1])
  H1 = int(params['w2'].shape[1])
  T = int(params['wa'].shape[1])
  TE = T * 64
  OUTW = 128
  assert T + 1 <= OUTW
  for k in (D, H0, H1, TE):
    assert k % 16 == 0, "contraction dims must be multiples of 16 (bf16 pack)"

  def fold(bn):                         # BatchNorm1d(eval) -> scale, shift
    g, b, m, v = bn
    s = g / jnp.sqrt(v + eps)
    return s, b - m * s

  s1, o1 = fold(params['bn1'])
  s2, o2 = fold(params['bn2'])
  sc1, oc1 = fold(params['bnc'])
  se1, oe1 = fold(params['bne'])        # (T, 64) each
  st1, ot1 = fold(params['bnt1'])
  st2, ot2 = fold(params['bnt2'])

  # cathode-column gather folded into rows of the first cathode weight.
  wc1_full = jnp.zeros((D, 64), f32).at[
      jnp.asarray(cathode_indices)].set(params['wc1'])

  # total head: BN folded into the Linear weights/biases, concat split along K.
  wt1_f = params['wt1'] * st1[None, :]
  bt1_f = params['bt1'] * st1 + ot1
  wt1_h, wt1_x, wt1_c = wt1_f[:H1], wt1_f[H1:H1 + D], wt1_f[H1 + D:]
  wt2_f = params['wt2'] * st2[None, :]
  bt2_f = params['bt2'] * st2 + ot2

  # emission heads: BN folded into the first Linear, heads fused along lanes,
  # [h | attn_i * cfeat] concat split along K (attention is a per-row scalar).
  we1_f = params['we1'] * se1[:, None, :]                # (T, H1+32, 64)
  be1_f = params['be1'] * se1 + oe1                      # (T, 64)
  we1_h = jnp.transpose(we1_f[:, :H1, :], (1, 0, 2)).reshape(H1, TE)
  we1_c = jnp.transpose(we1_f[:, H1:, :], (1, 0, 2)).reshape(32, TE)
  be_all = be1_f.reshape(TE)

  # focal attention pre-expanded: task i's gate repeated over its 64 lanes.
  wa_exp = jnp.repeat(params['wa'], 64, axis=1)          # (32, TE)
  ba_exp = jnp.repeat(params['ba'], 64)                  # (TE,)

  # merged final projection: lanes 0..T-1 = block-diagonal we2, lane T = wt3.
  wfin_e = jnp.zeros((TE, OUTW), f32)
  for i in range(T):
    wfin_e = wfin_e.at[i * 64:(i + 1) * 64, i].set(params['we2'][i, :, 0])
  wfin_t = jnp.zeros((32, OUTW), f32).at[:, T].set(params['wt3'][:, 0])
  bfin = (jnp.zeros((OUTW,), f32)
          .at[:T].set(params['be2'][:, 0])
          .at[T].set(params['bt3'][0]))

  # ---- shared-LHS lane fusion (weights side-by-side, biases fused) ----------
  wx = jnp.concatenate([params['w1'], wc1_full, wt1_x], axis=1)   # (D, H0+128)
  bx = jnp.concatenate([params['b1'], params['bc1'], bt1_f])
  wca = jnp.concatenate([wa_exp, wt1_c], axis=1)                  # (32, TE+64)
  bca = jnp.concatenate([ba_exp, jnp.zeros((64,), f32)])
  wcb = we1_c                                                     # (32, TE)
  wh = jnp.concatenate([we1_h, wt1_h], axis=1)                    # (H1, TE+64)
  bh = jnp.concatenate([be_all, jnp.zeros((64,), f32)])
  b2g = jnp.concatenate([params['b2'], params['bc2'], bt2_f])     # (H1+64,)

  # ---- slab packing ----------------------------------------------------------
  LA = _round_up(max(H0 + 128, TE + 64), 128)   # wide slab lane width (256)
  LB = OUTW                                     # narrow slab lane width (128)

  def build_slab(slab_id, lanes, blocks):
    # blocks: list of (name, weight, lane_width_seen_by_kernel)
    layout, rows, r = {}, [], 0
    for name, w, n_load in blocks:
      k, n = w.shape
      assert k % 16 == 0 and n <= lanes and n_load <= lanes
      layout[name] = (slab_id, r, k, n_load)
      rows.append(jnp.zeros((k, lanes), f32).at[:, :n].set(w))
      r += k
    return jnp.concatenate(rows, axis=0).astype(jnp.bfloat16), layout

  wa_slab, la = build_slab('a', LA, [
      ('wx', wx, LA), ('wca', wca, LA), ('wcb', wcb, LA), ('wh', wh, LA)])
  wb_slab, lb = build_slab('b', LB, [
      ('w2', params['w2'], H1), ('wc2', params['wc2'], 32),
      ('wt2', wt2_f, 32), ('wfe', wfin_e, OUTW), ('wft', wfin_t, OUTW)])
  wl = {**la, **lb}

  def padrow(v, n):
    return jnp.zeros((n,), f32).at[:v.shape[0]].set(v)

  vec_rows = [
      ('bx', padrow(bx, LA), LA),
      ('bca', padrow(bca, LA), LA),
      ('bh', padrow(bh, LA), LA),
      ('b2g', b2g, int(b2g.shape[0])),
      ('s1', s1, H0), ('o1', o1, H0),
      ('sc1', sc1, 64), ('oc1', oc1, 64),
      ('s2', s2, H1), ('o2', o2, H1),
      ('bfin', bfin, OUTW),
  ]
  LV = max(LA, LB)
  vbuf = jnp.zeros((_round_up(len(vec_rows), 8), LV), f32)
  vl = {}
  for i, (name, v, n) in enumerate(vec_rows):
    vl[name] = (i, n)
    vbuf = vbuf.at[i, :v.shape[0]].set(v)

  return {'wa': wa_slab, 'wb': wb_slab, 'v': vbuf, 'wl': wl, 'vl': vl,
          'dims': dict(D=D, H0=H0, H1=H1, T=T, OUTW=OUTW)}


# ------------------------------- per-call wrapper ------------------------------
def make_forward(packed):
  """Build the jitted per-call forward.  All packing work is already done."""
  d = packed['dims']
  D, H0, H1, T, OUTW = d['D'], d['H0'], d['H1'], d['T'], d['OUTW']
  kernel = functools.partial(_multitask_kernel, H0=H0, H1=H1, T=T,
                             wl=packed['wl'], vl=packed['vl'])

  @jax.jit
  def _forward(x, wa, wb, vb):
    B = x.shape[0]
    Bt = 512 if B > 512 else _round_up(max(B, 16), 16)   # bf16 sublane pack
    Bp = _round_up(B, Bt)
    xb = x.astype(jnp.bfloat16)
    if Bp != B:
      xb = jnp.pad(xb, ((0, Bp - B), (0, 0)))
    out = pl.pallas_call(
        kernel,
        out_shape=jax.ShapeDtypeStruct((Bp, OUTW), jnp.float32),
        grid=(Bp // Bt,),
        in_specs=[
            pl.BlockSpec((Bt, D), lambda i: (i, 0)),
            pl.BlockSpec(wa.shape, lambda i: (0, 0)),   # VMEM-resident weights
            pl.BlockSpec(wb.shape, lambda i: (0, 0)),
            pl.BlockSpec(vb.shape, lambda i: (0, 0)),
        ],
        out_specs=pl.BlockSpec((Bt, OUTW), lambda i: (i, 0)),
        compiler_params=pltpu.CompilerParams(
            dimension_semantics=("parallel",)),
    )(xb, wa, wb, vb)
    return out[:B, :T], out[:B, T:T + 1]

  return lambda x: _forward(x, packed['wa'], packed['wb'], packed['v'])


# ---------------------------- pure-JAX reference -------------------------------
def reference_forward(x, params, cathode_indices, num_tasks):
  eps = 1e-5
  bn_apply = lambda z, bn: (z - bn[2]) / jnp.sqrt(bn[3] + eps) * bn[0] + bn[1]
  gelu = lambda z: 0.5 * z * (1.0 + jax.scipy.special.erf(z * _SQRT_HALF))
  silu = lambda z: z * jax.nn.sigmoid(z)
  softplus = lambda z: jnp.where(z > 20.0, z, jnp.log1p(jnp.exp(z)))

  cath_in = x[:, jnp.asarray(cathode_indices)]
  zc = gelu(cath_in @ params['wc1'] + params['bc1'])
  zc = bn_apply(zc, params['bnc'])
  cathode_feat = zc @ params['wc2'] + params['bc2']
  attn = jax.nn.sigmoid(cathode_feat @ params['wa'] + params['ba'])

  h = bn_apply(silu(x @ params['w1'] + params['b1']), params['bn1'])
  h = bn_apply(silu(h @ params['w2'] + params['b2']), params['bn2'])

  cols = []
  for i in range(num_tasks):
    combined = jnp.concatenate([h, cathode_feat * attn[:, i:i + 1]], axis=1)
    ze = combined @ params['we1'][i] + params['be1'][i]
    ze = gelu(bn_apply(ze, tuple(a[i] for a in params['bne'])))
    cols.append(softplus(ze @ params['we2'][i] + params['be2'][i]))
  emissions = jnp.concatenate(cols, axis=1)

  tf = jnp.concatenate([h, x, cathode_feat], axis=1)
  zt = gelu(bn_apply(tf @ params['wt1'] + params['bt1'], params['bnt1']))
  zt = gelu(bn_apply(zt @ params['wt2'] + params['bt2'], params['bnt2']))
  total = softplus(zt @ params['wt3'] + params['bt3'])
  return emissions, total


# ----------------------------------- main --------------------------------------
if __name__ == "__main__":
  INPUT_SIZE = 32
  NUM_TASKS = 3
  HIDDEN_DIMS = [64, 32]
  CATHODE_INDICES = [1, 5, 9, 13, 17, 21, 25, 29]
  BATCH = 8

  key = jax.random.PRNGKey(0)
  pkey, xkey = jax.random.split(key)
  params = init_params(pkey, INPUT_SIZE, NUM_TASKS, HIDDEN_DIMS,
                       len(CATHODE_INDICES))
  x = jax.random.normal(xkey, (BATCH, INPUT_SIZE), jnp.float32)

  # Pack ONCE at model-load time (hoisted out of the per-call path), then
  # build the jitted forward which only consumes the packed device arrays.
  packed = pack_params(params, CATHODE_INDICES, INPUT_SIZE)
  jax.block_until_ready((packed['wa'], packed['wb'], packed['v']))
  forward = make_forward(packed)

  emissions, total = forward(x)
  jax.block_until_ready((emissions, total))
  # Second call reuses the compiled kernel and the packed slabs (no re-pack).
  emissions, total = forward(x)
  jax.block_until_ready((emissions, total))

  ref_em, ref_tot = reference_forward(x, params, CATHODE_INDICES, NUM_TASKS)
  assert emissions.shape == (BATCH, NUM_TASKS)
  assert total.shape == (BATCH, 1)
  err_e = float(jnp.max(jnp.abs(emissions - ref_em)))
  err_t = float(jnp.max(jnp.abs(total - ref_tot)))
  # tolerance sized for bf16 MXU operands + tanh-form GELU vs f32/erf reference
  assert jnp.allclose(emissions, ref_em, atol=3e-2, rtol=3e-2), err_e
  assert jnp.allclose(total, ref_tot, atol=3e-2, rtol=3e-2), err_t
  print("KERNEL_OK")
</pallas_src>

<mosaic_0001>
module attributes {stable_mosaic.version = 11 : i64} {
  func.func @_multitask_kernel(%arg0: i32, %arg1: memref<16x32xbf16, #tpu.memory_space<vmem>>, %arg2: memref<128x256xbf16, #tpu.memory_space<vmem>>, %arg3: memref<416x128xbf16, #tpu.memory_space<vmem>>, %arg4: memref<16x256xf32, #tpu.memory_space<vmem>>, %arg5: memref<16x128xf32, #tpu.memory_space<vmem>>) attributes {dimension_semantics = [#tpu.dimension_semantics<parallel>], iteration_bounds = array<i64: 1>, scalar_prefetch = 0 : i64, scratch_operands = 0 : i64, tpu.core_type = #tpu.core_type<tc>, window_params = [{transform_indices = @transform_0, window_bounds = array<i64: 16, 32>}, {pipeline_mode = #tpu.pipeline_mode<synchronous>, transform_indices = @transform_1, window_bounds = array<i64: 128, 256>}, {pipeline_mode = #tpu.pipeline_mode<synchronous>, transform_indices = @transform_2, window_bounds = array<i64: 416, 128>}, {pipeline_mode = #tpu.pipeline_mode<synchronous>, transform_indices = @transform_3, window_bounds = array<i64: 16, 256>}, {transform_indices = @transform_4, window_bounds = array<i64: 16, 128>}]} {
    %c0 = arith.constant 0 : index
    %c0_0 = arith.constant 0 : index
    %0 = vector.load %arg1[%c0, %c0_0] : memref<16x32xbf16, #tpu.memory_space<vmem>>, vector<16x32xbf16>
    %c0_1 = arith.constant 0 : index
    %c0_2 = arith.constant 0 : index
    %1 = vector.load %arg2[%c0_1, %c0_2] : memref<128x256xbf16, #tpu.memory_space<vmem>>, vector<32x256xbf16>
    %cst = arith.constant dense<0.000000e+00> : vector<16x256xf32>
    %2 = tpu.matmul %0, %1, %cst {dimension_numbers = #tpu.dot_dimension_numbers<[1], [0], [0], [1], [0, 0, 1, 1], [], []>} : vector<16x32xbf16>, vector<32x256xbf16>, vector<16x256xf32> -> vector<16x256xf32>
    %c0_3 = arith.constant 0 : index
    %c0_4 = arith.constant 0 : index
    %3 = vector.load %arg4[%c0_3, %c0_4] : memref<16x256xf32, #tpu.memory_space<vmem>>, vector<1x256xf32>
    %4 = vector.broadcast %3 : vector<1x256xf32> to vector<16x256xf32>
    %5 = arith.addf %2, %4 : vector<16x256xf32>
    %6 = vector.extract_strided_slice %5 {offsets = [0, 0], sizes = [16, 64], strides = [1, 1]} : vector<16x256xf32> to vector<16x64xf32>
    %cst_5 = arith.constant 0.000000e+00 : f32
    %7 = vector.broadcast %cst_5 : f32 to vector<16x64xf32>
    %8 = arith.subf %7, %6 : vector<16x64xf32>
    %9 = math.exp %8 : vector<16x64xf32>
    %cst_6 = arith.constant 1.000000e+00 : f32
    %10 = vector.broadcast %cst_6 : f32 to vector<16x64xf32>
    %11 = arith.addf %10, %9 : vector<16x64xf32>
    %cst_7 = arith.constant 1.000000e+00 : f32
    %12 = vector.broadcast %cst_7 : f32 to vector<16x64xf32>
    %13 = arith.divf %12, %11 : vector<16x64xf32>
    %14 = arith.mulf %6, %13 : vector<16x64xf32>
    %c4 = arith.constant 4 : index
    %c0_8 = arith.constant 0 : index
    %15 = vector.load %arg4[%c4, %c0_8] : memref<16x256xf32, #tpu.memory_space<vmem>>, vector<1x64xf32>
    %16 = vector.broadcast %15 : vector<1x64xf32> to vector<16x64xf32>
    %17 = arith.mulf %14, %16 : vector<16x64xf32>
    %c5 = arith.constant 5 : index
    %c0_9 = arith.constant 0 : index
    %18 = vector.load %arg4[%c5, %c0_9] : memref<16x256xf32, #tpu.memory_space<vmem>>, vector<1x64xf32>
    %19 = vector.broadcast %18 : vector<1x64xf32> to vector<16x64xf32>
    %20 = arith.addf %17, %19 : vector<16x64xf32>
    %21 = vector.extract_strided_slice %5 {offsets = [0, 64], sizes = [16, 64], strides = [1, 1]} : vector<16x256xf32> to vector<16x64xf32>
    %cst_10 = arith.constant 5.000000e-01 : f32
    %22 = vector.broadcast %cst_10 : f32 to vector<16x64xf32>
    %23 = arith.mulf %22, %21 : vector<16x64xf32>
    %cst_11 = arith.constant 4.471500e-02 : f32
    %24 = vector.broadcast %cst_11 : f32 to vector<16x64xf32>
    %25 = arith.mulf %24, %21 : vector<16x64xf32>
    %26 = arith.mulf %25, %21 : vector<16x64xf32>
    %27 = arith.mulf %26, %21 : vector<16x64xf32>
    %28 = arith.addf %21, %27 : vector<16x64xf32>
    %cst_12 = arith.constant 0.797884583 : f32
    %29 = vector.broadcast %cst_12 : f32 to vector<16x64xf32>
    %30 = arith.mulf %29, %28 : vector<16x64xf32>
    %31 = math.tanh %30 : vector<16x64xf32>
    %cst_13 = arith.constant 1.000000e+00 : f32
    %32 = vector.broadcast %cst_13 : f32 to vector<16x64xf32>
    %33 = arith.addf %32, %31 : vector<16x64xf32>
    %34 = arith.mulf %23, %33 : vector<16x64xf32>
    %c6 = arith.constant 6 : index
    %c0_14 = arith.constant 0 : index
    %35 = vector.load %arg4[%c6, %c0_14] : memref<16x256xf32, #tpu.memory_space<vmem>>, vector<1x64xf32>
    %36 = vector.broadcast %35 : vector<1x64xf32> to vector<16x64xf32>
    %37 = arith.mulf %34, %36 : vector<16x64xf32>
    %c7 = arith.constant 7 : index
    %c0_15 = arith.constant 0 : index
    %38 = vector.load %arg4[%c7, %c0_15] : memref<16x256xf32, #tpu.memory_space<vmem>>, vector<1x64xf32>
    %39 = vector.broadcast %38 : vector<1x64xf32> to vector<16x64xf32>
    %40 = arith.addf %37, %39 : vector<16x64xf32>
    %41 = vector.extract_strided_slice %5 {offsets = [0, 128], sizes = [16, 64], strides = [1, 1]} : vector<16x256xf32> to vector<16x64xf32>
    %c3 = arith.constant 3 : index
    %c0_16 = arith.constant 0 : index
    %42 = vector.load %arg4[%c3, %c0_16] : memref<16x256xf32, #tpu.memory_space<vmem>>, vector<1x96xf32>
    %43 = arith.truncf %20 : vector<16x64xf32> to vector<16x64xbf16>
    %c0_17 = arith.constant 0 : index
    %c0_18 = arith.constant 0 : index
    %44 = vector.load %arg3[%c0_17, %c0_18] : memref<416x128xbf16, #tpu.memory_space<vmem>>, vector<64x32xbf16>
    %cst_19 = arith.constant dense<0.000000e+00> : vector<16x32xf32>
    %45 = tpu.matmul %43, %44, %cst_19 {dimension_numbers = #tpu.dot_dimension_numbers<[1], [0], [0], [1], [0, 0, 1, 1], [], []>} : vector<16x64xbf16>, vector<64x32xbf16>, vector<16x32xf32> -> vector<16x32xf32>
    %46 = vector.extract_strided_slice %42 {offsets = [0, 0], sizes = [1, 32], strides = [1, 1]} : vector<1x96xf32> to vector<1x32xf32>
    %47 = vector.broadcast %46 : vector<1x32xf32> to vector<16x32xf32>
    %48 = arith.addf %45, %47 : vector<16x32xf32>
    %cst_20 = arith.constant 0.000000e+00 : f32
    %49 = vector.broadcast %cst_20 : f32 to vector<16x32xf32>
    %50 = arith.subf %49, %48 : vector<16x32xf32>
    %51 = math.exp %50 : vector<16x32xf32>
    %cst_21 = arith.constant 1.000000e+00 : f32
    %52 = vector.broadcast %cst_21 : f32 to vector<16x32xf32>
    %53 = arith.addf %52, %51 : vector<16x32xf32>
    %cst_22 = arith.constant 1.000000e+00 : f32
    %54 = vector.broadcast %cst_22 : f32 to vector<16x32xf32>
    %55 = arith.divf %54, %53 : vector<16x32xf32>
    %56 = arith.mulf %48, %55 : vector<16x32xf32>
    %c8 = arith.constant 8 : index
    %c0_23 = arith.constant 0 : index
    %57 = vector.load %arg4[%c8, %c0_23] : memref<16x256xf32, #tpu.memory_space<vmem>>, vector<1x32xf32>
    %58 = vector.broadcast %57 : vector<1x32xf32> to vector<16x32xf32>
    %59 = arith.mulf %56, %58 : vector<16x32xf32>
    %c9 = arith.constant 9 : index
    %c0_24 = arith.constant 0 : index
    %60 = vector.load %arg4[%c9, %c0_24] : memref<16x256xf32, #tpu.memory_space<vmem>>, vector<1x32xf32>
    %61 = vector.broadcast %60 : vector<1x32xf32> to vector<16x32xf32>
    %62 = arith.addf %59, %61 : vector<16x32xf32>
    %63 = arith.truncf %40 : vector<16x64xf32> to vector<16x64xbf16>
    %c64 = arith.constant 64 : index
    %c0_25 = arith.constant 0 : index
    %64 = vector.load %arg3[%c64, %c0_25] : memref<416x128xbf16, #tpu.memory_space<vmem>>, vector<64x32xbf16>
    %cst_26 = arith.constant dense<0.000000e+00> : vector<16x32xf32>
    %65 = tpu.matmul %63, %64, %cst_26 {dimension_numbers = #tpu.dot_dimension_numbers<[1], [0], [0], [1], [0, 0, 1, 1], [], []>} : vector<16x64xbf16>, vector<64x32xbf16>, vector<16x32xf32> -> vector<16x32xf32>
    %66 = vector.extract_strided_slice %42 {offsets = [0, 32], sizes = [1, 32], strides = [1, 1]} : vector<1x96xf32> to vector<1x32xf32>
    %67 = vector.broadcast %66 : vector<1x32xf32> to vector<16x32xf32>
    %68 = arith.addf %65, %67 : vector<16x32xf32>
    %69 = arith.truncf %68 : vector<16x32xf32> to vector<16x32xbf16>
    %c32 = arith.constant 32 : index
    %c0_27 = arith.constant 0 : index
    %70 = vector.load %arg2[%c32, %c0_27] : memref<128x256xbf16, #tpu.memory_space<vmem>>, vector<32x256xbf16>
    %cst_28 = arith.constant dense<0.000000e+00> : vector<16x256xf32>
    %71 = tpu.matmul %69, %70, %cst_28 {dimension_numbers = #tpu.dot_dimension_numbers<[1], [0], [0], [1], [0, 0, 1, 1], [], []>} : vector<16x32xbf16>, vector<32x256xbf16>, vector<16x256xf32> -> vector<16x256xf32>
    %c1 = arith.constant 1 : index
    %c0_29 = arith.constant 0 : index
    %72 = vector.load %arg4[%c1, %c0_29] : memref<16x256xf32, #tpu.memory_space<vmem>>, vector<1x256xf32>
    %73 = vector.broadcast %72 : vector<1x256xf32> to vector<16x256xf32>
    %74 = arith.addf %71, %73 : vector<16x256xf32>
    %75 = vector.extract_strided_slice %74 {offsets = [0, 0], sizes = [16, 192], strides = [1, 1]} : vector<16x256xf32> to vector<16x192xf32>
    %cst_30 = arith.constant 0.000000e+00 : f32
    %76 = vector.broadcast %cst_30 : f32 to vector<16x192xf32>
    %77 = arith.subf %76, %75 : vector<16x192xf32>
    %78 = math.exp %77 : vector<16x192xf32>
    %cst_31 = arith.constant 1.000000e+00 : f32
    %79 = vector.broadcast %cst_31 : f32 to vector<16x192xf32>
    %80 = arith.addf %79, %78 : vector<16x192xf32>
    %cst_32 = arith.constant 1.000000e+00 : f32
    %81 = vector.broadcast %cst_32 : f32 to vector<16x192xf32>
    %82 = arith.divf %81, %80 : vector<16x192xf32>
    %83 = vector.extract_strided_slice %74 {offsets = [0, 192], sizes = [16, 64], strides = [1, 1]} : vector<16x256xf32> to vector<16x64xf32>
    %84 = arith.truncf %68 : vector<16x32xf32> to vector<16x32xbf16>
    %c64_33 = arith.constant 64 : index
    %c0_34 = arith.constant 0 : index
    %85 = vector.load %arg2[%c64_33, %c0_34] : memref<128x256xbf16, #tpu.memory_space<vmem>>, vector<32x256xbf16>
    %cst_35 = arith.constant dense<0.000000e+00> : vector<16x256xf32>
    %86 = tpu.matmul %84, %85, %cst_35 {dimension_numbers = #tpu.dot_dimension_numbers<[1], [0], [0], [1], [0, 0, 1, 1], [], []>} : vector<16x32xbf16>, vector<32x256xbf16>, vector<16x256xf32> -> vector<16x256xf32>
    %87 = arith.truncf %62 : vector<16x32xf32> to vector<16x32xbf16>
    %c96 = arith.constant 96 : index
    %c0_36 = arith.constant 0 : index
    %88 = vector.load %arg2[%c96, %c0_36] : memref<128x256xbf16, #tpu.memory_space<vmem>>, vector<32x256xbf16>
    %cst_37 = arith.constant dense<0.000000e+00> : vector<16x256xf32>
    %89 = tpu.matmul %87, %88, %cst_37 {dimension_numbers = #tpu.dot_dimension_numbers<[1], [0], [0], [1], [0, 0, 1, 1], [], []>} : vector<16x32xbf16>, vector<32x256xbf16>, vector<16x256xf32> -> vector<16x256xf32>
    %c2 = arith.constant 2 : index
    %c0_38 = arith.constant 0 : index
    %90 = vector.load %arg4[%c2, %c0_38] : memref<16x256xf32, #tpu.memory_space<vmem>>, vector<1x256xf32>
    %91 = vector.broadcast %90 : vector<1x256xf32> to vector<16x256xf32>
    %92 = arith.addf %89, %91 : vector<16x256xf32>
    %93 = vector.extract_strided_slice %92 {offsets = [0, 0], sizes = [16, 192], strides = [1, 1]} : vector<16x256xf32> to vector<16x192xf32>
    %94 = vector.extract_strided_slice %86 {offsets = [0, 0], sizes = [16, 192], strides = [1, 1]} : vector<16x256xf32> to vector<16x192xf32>
    %95 = arith.mulf %82, %94 : vector<16x192xf32>
    %96 = arith.addf %93, %95 : vector<16x192xf32>
    %cst_39 = arith.constant 5.000000e-01 : f32
    %97 = vector.broadcast %cst_39 : f32 to vector<16x192xf32>
    %98 = arith.mulf %97, %96 : vector<16x192xf32>
    %cst_40 = arith.constant 4.471500e-02 : f32
    %99 = vector.broadcast %cst_40 : f32 to vector<16x192xf32>
    %100 = arith.mulf %99, %96 : vector<16x192xf32>
    %101 = arith.mulf %100, %96 : vector<16x192xf32>
    %102 = arith.mulf %101, %96 : vector<16x192xf32>
    %103 = arith.addf %96, %102 : vector<16x192xf32>
    %cst_41 = arith.constant 0.797884583 : f32
    %104 = vector.broadcast %cst_41 : f32 to vector<16x192xf32>
    %105 = arith.mulf %104, %103 : vector<16x192xf32>
    %106 = math.tanh %105 : vector<16x192xf32>
    %cst_42 = arith.constant 1.000000e+00 : f32
    %107 = vector.broadcast %cst_42 : f32 to vector<16x192xf32>
    %108 = arith.addf %107, %106 : vector<16x192xf32>
    %109 = arith.mulf %98, %108 : vector<16x192xf32>
    %110 = vector.extract_strided_slice %92 {offsets = [0, 192], sizes = [16, 64], strides = [1, 1]} : vector<16x256xf32> to vector<16x64xf32>
    %111 = arith.addf %41, %110 : vector<16x64xf32>
    %112 = arith.addf %111, %83 : vector<16x64xf32>
    %cst_43 = arith.constant 5.000000e-01 : f32
    %113 = vector.broadcast %cst_43 : f32 to vector<16x64xf32>
    %114 = arith.mulf %113, %112 : vector<16x64xf32>
    %cst_44 = arith.constant 4.471500e-02 : f32
    %115 = vector.broadcast %cst_44 : f32 to vector<16x64xf32>
    %116 = arith.mulf %115, %112 : vector<16x64xf32>
    %117 = arith.mulf %116, %112 : vector<16x64xf32>
    %118 = arith.mulf %117, %112 : vector<16x64xf32>
    %119 = arith.addf %112, %118 : vector<16x64xf32>
    %cst_45 = arith.constant 0.797884583 : f32
    %120 = vector.broadcast %cst_45 : f32 to vector<16x64xf32>
    %121 = arith.mulf %120, %119 : vector<16x64xf32>
    %122 = math.tanh %121 : vector<16x64xf32>
    %cst_46 = arith.constant 1.000000e+00 : f32
    %123 = vector.broadcast %cst_46 : f32 to vector<16x64xf32>
    %124 = arith.addf %123, %122 : vector<16x64xf32>
    %125 = arith.mulf %114, %124 : vector<16x64xf32>
    %126 = arith.truncf %125 : vector<16x64xf32> to vector<16x64xbf16>
    %c128 = arith.constant 128 : index
    %c0_47 = arith.constant 0 : index
    %127 = vector.load %arg3[%c128, %c0_47] : memref<416x128xbf16, #tpu.memory_space<vmem>>, vector<64x32xbf16>
    %cst_48 = arith.constant dense<0.000000e+00> : vector<16x32xf32>
    %128 = tpu.matmul %126, %127, %cst_48 {dimension_numbers = #tpu.dot_dimension_numbers<[1], [0], [0], [1], [0, 0, 1, 1], [], []>} : vector<16x64xbf16>, vector<64x32xbf16>, vector<16x32xf32> -> vector<16x32xf32>
    %129 = vector.extract_strided_slice %42 {offsets = [0, 64], sizes = [1, 32], strides = [1, 1]} : vector<1x96xf32> to vector<1x32xf32>
    %130 = vector.broadcast %129 : vector<1x32xf32> to vector<16x32xf32>
    %131 = arith.addf %128, %130 : vector<16x32xf32>
    %cst_49 = arith.constant 5.000000e-01 : f32
    %132 = vector.broadcast %cst_49 : f32 to vector<16x32xf32>
    %133 = arith.mulf %132, %131 : vector<16x32xf32>
    %cst_50 = arith.constant 4.471500e-02 : f32
    %134 = vector.broadcast %cst_50 : f32 to vector<16x32xf32>
    %135 = arith.mulf %134, %131 : vector<16x32xf32>
    %136 = arith.mulf %135, %131 : vector<16x32xf32>
    %137 = arith.mulf %136, %131 : vector<16x32xf32>
    %138 = arith.addf %131, %137 : vector<16x32xf32>
    %cst_51 = arith.constant 0.797884583 : f32
    %139 = vector.broadcast %cst_51 : f32 to vector<16x32xf32>
    %140 = arith.mulf %139, %138 : vector<16x32xf32>
    %141 = math.tanh %140 : vector<16x32xf32>
    %cst_52 = arith.constant 1.000000e+00 : f32
    %142 = vector.broadcast %cst_52 : f32 to vector<16x32xf32>
    %143 = arith.addf %142, %141 : vector<16x32xf32>
    %144 = arith.mulf %133, %143 : vector<16x32xf32>
    %145 = arith.truncf %109 : vector<16x192xf32> to vector<16x192xbf16>
    %c192 = arith.constant 192 : index
    %c0_53 = arith.constant 0 : index
    %146 = vector.load %arg3[%c192, %c0_53] : memref<416x128xbf16, #tpu.memory_space<vmem>>, vector<192x128xbf16>
    %cst_54 = arith.constant dense<0.000000e+00> : vector<16x128xf32>
    %147 = tpu.matmul %145, %146, %cst_54 {dimension_numbers = #tpu.dot_dimension_numbers<[1], [0], [0], [1], [0, 0, 1, 1], [], []>} : vector<16x192xbf16>, vector<192x128xbf16>, vector<16x128xf32> -> vector<16x128xf32>
    %148 = arith.truncf %144 : vector<16x32xf32> to vector<16x32xbf16>
    %c384 = arith.constant 384 : index
    %c0_55 = arith.constant 0 : index
    %149 = vector.load %arg3[%c384, %c0_55] : memref<416x128xbf16, #tpu.memory_space<vmem>>, vector<32x128xbf16>
    %cst_56 = arith.constant dense<0.000000e+00> : vector<16x128xf32>
    %150 = tpu.matmul %148, %149, %cst_56 {dimension_numbers = #tpu.dot_dimension_numbers<[1], [0], [0], [1], [0, 0, 1, 1], [], []>} : vector<16x32xbf16>, vector<32x128xbf16>, vector<16x128xf32> -> vector<16x128xf32>
    %151 = arith.addf %147, %150 : vector<16x128xf32>
    %c10 = arith.constant 10 : index
    %c0_57 = arith.constant 0 : index
    %152 = vector.load %arg4[%c10, %c0_57] : memref<16x256xf32, #tpu.memory_space<vmem>>, vector<1x128xf32>
    %153 = vector.broadcast %152 : vector<1x128xf32> to vector<16x128xf32>
    %154 = arith.addf %151, %153 : vector<16x128xf32>
    %cst_58 = arith.constant 0.000000e+00 : f32
    %155 = vector.broadcast %cst_58 : f32 to vector<16x128xf32>
    %156 = arith.maximumf %154, %155 : vector<16x128xf32>
    %157 = math.absf %154 : vector<16x128xf32>
    %cst_59 = arith.constant 0.000000e+00 : f32
    %158 = vector.broadcast %cst_59 : f32 to vector<16x128xf32>
    %159 = arith.subf %158, %157 : vector<16x128xf32>
    %160 = math.exp %159 : vector<16x128xf32>
    %cst_60 = arith.constant 1.000000e+00 : f32
    %161 = vector.broadcast %cst_60 : f32 to vector<16x128xf32>
    %162 = arith.addf %161, %160 : vector<16x128xf32>
    %163 = math.log %162 : vector<16x128xf32>
    %164 = arith.addf %156, %163 : vector<16x128xf32>
    %c0_61 = arith.constant 0 : index
    %c0_62 = arith.constant 0 : index
    %165 = vector.load %arg5[%c0_61, %c0_62] : memref<16x128xf32, #tpu.memory_space<vmem>>, vector<16x128xf32>
    tpu.vector_store %arg5[%c0_61, %c0_62], %164 {strides = array<i32>} : memref<16x128xf32, #tpu.memory_space<vmem>>, vector<16x128xf32>,
    return
  }
  func.func @transform_0(%arg0: i32) -> (i32, i32) {
    %c0_i32 = arith.constant 0 : i32
    %c0_i32_0 = arith.constant 0 : i32
    return %arg0, %c0_i32 : i32, i32
  }
  func.func @transform_1(%arg0: i32) -> (i32, i32) {
    %c0_i32 = arith.constant 0 : i32
    %c0_i32_0 = arith.constant 0 : i32
    %c0_i32_1 = arith.constant 0 : i32
    return %c0_i32, %c0_i32_0 : i32, i32
  }
  func.func @transform_2(%arg0: i32) -> (i32, i32) {
    %c0_i32 = arith.constant 0 : i32
    %c0_i32_0 = arith.constant 0 : i32
    %c0_i32_1 = arith.constant 0 : i32
    return %c0_i32, %c0_i32_0 : i32, i32
  }
  func.func @transform_3(%arg0: i32) -> (i32, i32) {
    %c0_i32 = arith.constant 0 : i32
    %c0_i32_0 = arith.constant 0 : i32
    %c0_i32_1 = arith.constant 0 : i32
    return %c0_i32, %c0_i32_0 : i32, i32
  }
  func.func @transform_4(%arg0: i32) -> (i32, i32) {
    %c0_i32 = arith.constant 0 : i32
    %c0_i32_0 = arith.constant 0 : i32
    return %arg0, %c0_i32 : i32, i32
  }
}

</mosaic_0001>

<llo_original>
// kernel: _forward.1
$region0: #{_forward.1}
  #allocation0 [shape = 'u32[]', space=smem, size = 0x4, offset = 0x4, fixed_abs, tag = 'smem constant byte address 0x4 - core index']
  #allocation1 [shape = 'u32[144,128]{1,0:T(1,128)}', space=vmem, size = 0x12000, scoped, tag = 'internal scratch']
  %s0 = inlined_call_operand.vmem [shape: bf16[16,32], index: 0, kind: input, shape index: {}]
  %s1 = inlined_call_operand.hbm [shape: bf16[128,256], index: 1, kind: input, shape index: {}]
  %s2 = inlined_call_operand.hbm [shape: bf16[416,128], index: 2, kind: input, shape index: {}]
  %s3 = inlined_call_operand.hbm [shape: f32[16,256], index: 3, kind: input, shape index: {}]
  %s4 = inlined_call_operand.vmem [shape: f32[16,128], index: 4, kind: output, shape index: {}]
  %s5 = sld [smem:[#allocation0]]
  $region38: #{_forward.1} parent=0
    _
  %s7 = ssub.s32 1, %s5
  %s8 = scalar_select 0, %s7, %s5
  $region1: #{_forward.1} parent=0
    #allocation2 [shape = 'u8[65536]{0}', space=vmem, size = 0x10000, scoped, tag = 'input window, operand 1, single buffered']
    #allocation3 [shape = 's32[1]{0}', space=sflag, size = 0x4, scoped, tag = 'scoped memory for _forward.1']
    #allocation4 [shape = 'u8[106496]{0}', space=vmem, size = 0x1a000, scoped, tag = 'input window, operand 2, single buffered']
    #allocation5 [shape = 's32[1]{0}', space=sflag, size = 0x4, scoped, tag = 'scoped memory for _forward.1']
    #allocation6 [shape = 'u8[16384]{0}', space=vmem, size = 0x4000, scoped, tag = 'input window, operand 3, single buffered']
    %9 = vsyncpa [#allocation3], 0
    %10 = vsyncpa [#allocation5], 0
    // Predicated region
    $region2: #{_forward.1} parent=1 // pred_check
      _
    $region3: #{_forward.1} parent=1 // pred_check_branch
      %12 = sbr.rel (0) target = $region5
    $region4: #{_forward.1} parent=1 // pred_region
      _
    $region5: #{_forward.1} parent=1 // pred_fallthru
      _
    // Predicated region
    $region6: #{_forward.1} parent=1 // pred_check
      _
    $region7: #{_forward.1} parent=1 // pred_check_branch
      %14 = sbr.rel (0) target = $region9
    $region8: #{_forward.1} parent=1 // pred_region
      %s16 = ssub.s32 2048, 2048
      %17 = vsyncadd [#allocation3], %s16
      %s18 = sshll.u32 [#allocation2], 4
      %s19 = int_to_ptr.vmem [resolvable:$true] %s18
      %24 = dma.hbm_to_vmem [thread:$0]  %s1, 2048, %s19, [#allocation3], 128, 128, 8
    $region9: #{_forward.1} parent=1 // pred_fallthru
      _
    // Predicated region
    $region10: #{_forward.1} parent=1 // pred_check
      _
    $region11: #{_forward.1} parent=1 // pred_check_branch
      %26 = sbr.rel (0) target = $region13
    $region12: #{_forward.1} parent=1 // pred_region
      %s28 = ssub.s32 3328, 3328
      %29 = vsyncadd [#allocation5], %s28
      %s30 = sshll.u32 [#allocation4], 4
      %s31 = int_to_ptr.vmem [resolvable:$true] %s30
      %36 = dma.hbm_to_vmem [thread:$0]  %s2, 3328, %s31, [#allocation5], 64, 64, 4
    $region13: #{_forward.1} parent=1 // pred_fallthru
      _
    // Predicated region
    $region14: #{_forward.1} parent=1 // pred_check
      _
    $region15: #{_forward.1} parent=1 // pred_check_branch
      %38 = sbr.rel (0) target = $region17
    $region16: #{_forward.1} parent=1 // pred_region
      %s40 = ssub.s32 512, 512
      %41 = vsyncadd [#allocation5], %s40
      %s42 = sshll.u32 [#allocation6], 4
      %s43 = int_to_ptr.vmem [resolvable:$true] %s42
      %48 = dma.hbm_to_vmem [thread:$0]  %s3, 512, %s43, [#allocation5], 256, 256, 16
    $region17: #{_forward.1} parent=1 // pred_fallthru
      _
    // Predicated region
    $region18: #{_forward.1} parent=1 // pred_check
      _
    $region19: #{_forward.1} parent=1 // pred_check_branch
      %50 = sbr.rel (0) target = $region21
    $region20: #{_forward.1} parent=1 // pred_region
      %51 = dma.done [#allocation3], 2048
    $region21: #{_forward.1} parent=1 // pred_fallthru
      _
    // Predicated region
    $region22: #{_forward.1} parent=1 // pred_check
      _
    $region23: #{_forward.1} parent=1 // pred_check_branch
      %53 = sbr.rel (0) target = $region25
    $region24: #{_forward.1} parent=1 // pred_region
      %54 = dma.done [#allocation5], 3328
    $region25: #{_forward.1} parent=1 // pred_fallthru
      _
    // Predicated region
    $region26: #{_forward.1} parent=1 // pred_check
      _
    $region27: #{_forward.1} parent=1 // pred_check_branch
      %56 = sbr.rel (0) target = $region29
    $region28: #{_forward.1} parent=1 // pred_region
      %57 = dma.done [#allocation5], 512
    $region29: #{_forward.1} parent=1 // pred_fallthru
      _
    %v59 = vld [vmem:[%s0] sm:$0xf]
    %v60 = vld [vmem:[%s0 + $0x4] sm:$0xf]
    %v61 = vld [vmem:[#allocation2] sm:$0xff]
    %v62 = vld [vmem:[#allocation2 + $0x8] sm:$0xff]
    %v63 = vld [vmem:[#allocation2 + $0x10] sm:$0xff]
    %v64 = vld [vmem:[#allocation2 + $0x18] sm:$0xff]
    %v65 = vld [vmem:[#allocation6] ss:$8 sm:$0x3]
    %v67 = vlaneseq
    %v68 = vshrl.u32 %v67, 7
    %v69 = vsub.s32 0, %v68
    %v70 = vrot.slane %v65, %v69
    %v71 = vlaneseq
    %v72 = vshrl.u32 %v71, 7
    %v73 = vsub.s32 1, %v72
    %v74 = vrot.slane %v65, %v73
    %v79 = vunpack.c.l.b16 %v59
    %v80 = vunpack.c.l.b16 %v60
    %v81 = vpack.c.b16 %v80, %v79
    %v86 = vunpack.c.l.b16 %v61
    %v87 = vunpack.c.h.b16 %v61
    %v88 = vunpack.c.l.b16 %v62
    %v89 = vunpack.c.h.b16 %v62
    %v90 = vunpack.c.l.b16 %v63
    %v91 = vunpack.c.h.b16 %v63
    %v92 = vunpack.c.l.b16 %v64
    %v93 = vunpack.c.h.b16 %v64
    %v94 = vpack.c.b16 %v88, %v86
    %v95 = vpack.c.b16 %v89, %v87
    %v96 = vpack.c.b16 %v92, %v90
    %v97 = vpack.c.b16 %v93, %v91
    %vm102 = vcmask 261120
    %v104 = vsel %vm102, %v81, 0
    %106 = vmatprep.subr.bf16.mxu0 0
    %107 = vmatpush1.bf16.msra.mxu0 0
    %108 = vmatprep.subr.bf16.mxu0 0
    %109 = vmatpush1.bf16.msra.mxu0 0
    %110 = vmatprep.subr.bf16.mxu0 0
    %111 = vmatpush1.bf16.msra.mxu0 0
    %112 = vmatprep.subr.bf16.mxu0 0
    %113 = vmatpush1.bf16.msra.mxu0 0
    %114 = vmatprep.subr.bf16.mxu0 0
    %115 = vmatpush1.bf16.msra.mxu0 0
    %116 = vmatprep.subr.bf16.mxu0 0
    %117 = vmatpush1.bf16.msra.mxu0 0
    %118 = vmatprep.subr.bf16.mxu0 %v97
    %119 = vmatpush1.bf16.msra.mxu0 %v96
    %120 = vmatprep.subr.bf16.mxu0 %v95
    %121 = vmatpush1.bf16.msra.mxu0 %v94
    %122 = vmatprep.subr.bf16.mxu0 0
    %123 = vmatpush2.bf16.msra.mxu0 0
    %124 = vmatprep.subr.bf16.mxu0 0
    %125 = vmatpush2.bf16.msra.mxu0 0
    %126 = vmatprep.subr.bf16.mxu0 0
    %127 = vmatpush2.bf16.msra.mxu0 0
    %128 = vmatprep.subr.bf16.mxu0 0
    %129 = vmatpush2.bf16.msra.mxu0 0
    %130 = vmatprep.subr.bf16.mxu0 0
    %131 = vmatpush2.bf16.msra.mxu0 0
    %132 = vmatprep.subr.bf16.mxu0 0
    %133 = vmatpush2.bf16.msra.mxu0 0
    %134 = vmatprep.subr.bf16.mxu0 0
    %135 = vmatpush2.bf16.msra.mxu0 0
    %136 = vmatprep.subr.bf16.mxu0 0
    %137 = vmatpush2.bf16.msra.mxu0 0
    %138 = vmatprep.mubr.bf16.mxu0 0
    %139 = vmatmul.mubr.bf16.gmra.mxu0 %v104
    %v140 = vpop.f32.mrf.mxu0
    %v141 = vadd.f32 %v70, %v140
    %v142 = vpop.f32.mrf.mxu0
    %v143 = vadd.f32 %v74, %v142
    %v144 = vpop.f32.mrf.mxu0
    %v145 = vadd.f32 %v70, %v144
    %v146 = vpop.f32.mrf.mxu0
    %v147 = vadd.f32 %v74, %v146
    %148 = vdwg.mxu0
    %v149 = vsub.f32 0.0, %v141
    %v150 = vsub.f32 0.0, %v145
    %v151 = vmul.f32 %v149, 1.442695
    %v152 = vpow.pop %v151
    %v153 = vmul.f32 %v150, 1.442695
    %v154 = vpow.pop %v153
    %v155 = vadd.f32 %v152, 1.0
    %v156 = vadd.f32 %v154, 1.0
    %v157 = vrcp.pop %v155
    %v158 = vmul.f32 1.0, %v157
    %v159 = vrcp.pop %v156
    %v160 = vmul.f32 1.0, %v159
    %v161 = vmul.f32 %v141, %v158
    %v162 = vmul.f32 %v145, %v160
    %v163 = vld [vmem:[#allocation6 + $0x4] ss:$0 sm:$0xff]
    %v164 = vmul.f32 %v161, %v163
    %v165 = vmul.f32 %v162, %v163
    %v166 = vld [vmem:[#allocation6 + $0x5] ss:$0 sm:$0xff]
    %v167 = vadd.f32 %v164, %v166
    %v168 = vadd.f32 %v165, %v166
    %v169 = vmul.f32 %v141, 0.5
    %v170 = vmul.f32 %v145, 0.5
    %v171 = vmul.f32 %v141, 0.044715
    %v172 = vmul.f32 %v145, 0.044715
    %v173 = vmul.f32 %v171, %v141
    %v174 = vmul.f32 %v172, %v145
    %v175 = vmul.f32 %v173, %v141
    %v176 = vmul.f32 %v174, %v145
    %v177 = vadd.f32 %v141, %v175
    %v178 = vadd.f32 %v145, %v176
    %v179 = vmul.f32 %v177, 0.7978846
    %v180 = vmul.f32 %v178, 0.7978846
    %v181 = vtanh.pop %v179
    %v182 = vtanh.pop %v180
    %v183 = vadd.f32 %v181, 1.0
    %v184 = vadd.f32 %v182, 1.0
    %v185 = vmul.f32 %v169, %v183
    %v186 = vmul.f32 %v170, %v184
    %v187 = vld [vmem:[#allocation6 + $0x6] ss:$0 sm:$0xff]
    %189 = vrot.lane.b32.xlu0 %v187, 64
    %v190 = vpop.permute.xlu0 %189
    %v192 = vmul.f32 %v185, %v190
    %v193 = vmul.f32 %v186, %v190
    %v194 = vld [vmem:[#allocation6 + $0x7] ss:$0 sm:$0xff]
    %196 = vrot.lane.b32.xlu0 %v194, 64
    %v197 = vpop.permute.xlu0 %196
    %v199 = vadd.f32 %v192, %v197
    %v200 = vadd.f32 %v193, %v197
    %v201 = vld [vmem:[#allocation6 + $0x3] ss:$0 sm:$0xff]
    %v202 = vpack.c.bf16 %v168, %v167
    %v203 = vld [vmem:[#allocation4] sm:$0xf]
    %v204 = vld [vmem:[#allocation4 + $0x4] sm:$0xf]
    %v205 = vld [vmem:[#allocation4 + $0x8] sm:$0xf]
    %v206 = vld [vmem:[#allocation4 + $0xc] sm:$0xf]
    %v207 = vld [vmem:[#allocation4 + $0x10] sm:$0xf]
    %v208 = vld [vmem:[#allocation4 + $0x14] sm:$0xf]
    %v209 = vld [vmem:[#allocation4 + $0x18] sm:$0xf]
    %v210 = vld [vmem:[#allocation4 + $0x1c] sm:$0xf]
    %v219 = vunpack.c.l.b16 %v203
    %v220 = vunpack.c.l.b16 %v204
    %v221 = vunpack.c.l.b16 %v205
    %v222 = vunpack.c.l.b16 %v206
    %v223 = vunpack.c.l.b16 %v207
    %v224 = vunpack.c.l.b16 %v208
    %v225 = vunpack.c.l.b16 %v209
    %v226 = vunpack.c.l.b16 %v210
    %v227 = vpack.c.b16 %v220, %v219
    %v228 = vpack.c.b16 %v222, %v221
    %v229 = vpack.c.b16 %v224, %v223
    %v230 = vpack.c.b16 %v226, %v225
    %vm235 = vcmask 523264
    %v237 = vsel %vm235, %v202, 0
    %239 = vmatprep.subr.bf16.mxu0 0
    %240 = vmatpush1.bf16.msra.mxu0 0
    %241 = vmatprep.subr.bf16.mxu0 0
    %242 = vmatpush1.bf16.msra.mxu0 0
    %243 = vmatprep.subr.bf16.mxu0 0
    %244 = vmatpush1.bf16.msra.mxu0 0
    %245 = vmatprep.subr.bf16.mxu0 0
    %246 = vmatpush1.bf16.msra.mxu0 0
    %247 = vmatprep.subr.bf16.mxu0 0
    %248 = vmatpush1.bf16.msra.mxu0 %v230
    %249 = vmatprep.subr.bf16.mxu0 0
    %250 = vmatpush1.bf16.msra.mxu0 %v229
    %251 = vmatprep.subr.bf16.mxu0 0
    %252 = vmatpush1.bf16.msra.mxu0 %v228
    %253 = vmatprep.subr.bf16.mxu0 0
    %254 = vmatpush1.bf16.msra.mxu0 %v227
    %255 = vmatprep.subr.bf16.mxu0 0
    %256 = vmatpush2.bf16.msra.mxu0 0
    %257 = vmatprep.subr.bf16.mxu0 0
    %258 = vmatpush2.bf16.msra.mxu0 0
    %259 = vmatprep.subr.bf16.mxu0 0
    %260 = vmatpush2.bf16.msra.mxu0 0
    %261 = vmatprep.subr.bf16.mxu0 0
    %262 = vmatpush2.bf16.msra.mxu0 0
    %263 = vmatprep.subr.bf16.mxu0 0
    %264 = vmatpush2.bf16.msra.mxu0 0
    %265 = vmatprep.subr.bf16.mxu0 0
    %266 = vmatpush2.bf16.msra.mxu0 0
    %267 = vmatprep.subr.bf16.mxu0 0
    %268 = vmatpush2.bf16.msra.mxu0 0
    %269 = vmatprep.subr.bf16.mxu0 0
    %270 = vmatpush2.bf16.msra.mxu0 0
    %271 = vmatprep.mubr.bf16.mxu0 0
    %272 = vmatmul.mubr.bf16.gmra.mxu0 %v237
    %v273 = vpop.f32.mrf.mxu0
    %v274 = vadd.f32 %v201, %v273
    %v275 = vpop.f32.mrf.mxu0
    %v276 = vpop.f32.mrf.mxu0
    %v277 = vadd.f32 %v201, %v276
    %v278 = vpop.f32.mrf.mxu0
    %279 = vdwg.mxu0
    %v280 = vsub.f32 0.0, %v274
    %v281 = vsub.f32 0.0, %v277
    %v282 = vmul.f32 %v280, 1.442695
    %v283 = vpow.pop %v282
    %v284 = vmul.f32 %v281, 1.442695
    %v285 = vpow.pop %v284
    %v286 = vadd.f32 %v283, 1.0
    %v287 = vadd.f32 %v285, 1.0
    %v288 = vrcp.pop %v286
    %v289 = vmul.f32 1.0, %v288
    %v290 = vrcp.pop %v287
    %v291 = vmul.f32 1.0, %v290
    %v292 = vmul.f32 %v274, %v289
    %v293 = vmul.f32 %v277, %v291
    %v294 = vld [vmem:[#allocation6 + $0x10] ss:$0 sm:$0xff]
    %v295 = vmul.f32 %v292, %v294
    %v296 = vmul.f32 %v293, %v294
    %v297 = vld [vmem:[#allocation6 + $0x11] ss:$0 sm:$0xff]
    %v298 = vadd.f32 %v295, %v297
    %v299 = vadd.f32 %v296, %v297
    %v300 = vpack.c.bf16 %v200, %v199
    %v301 = vld [vmem:[#allocation4 + $0x20] sm:$0xf]
    %v302 = vld [vmem:[#allocation4 + $0x24] sm:$0xf]
    %v303 = vld [vmem:[#allocation4 + $0x28] sm:$0xf]
    %v304 = vld [vmem:[#allocation4 + $0x2c] sm:$0xf]
    %v305 = vld [vmem:[#allocation4 + $0x30] sm:$0xf]
    %v306 = vld [vmem:[#allocation4 + $0x34] sm:$0xf]
    %v307 = vld [vmem:[#allocation4 + $0x38] sm:$0xf]
    %v308 = vld [vmem:[#allocation4 + $0x3c] sm:$0xf]
    %310 = vrot.lane.b32.xlu0 %v300, 64
    %v311 = vpop.permute.xlu0 %310
    %v320 = vunpack.c.l.b16 %v301
    %v321 = vunpack.c.l.b16 %v302
    %v322 = vunpack.c.l.b16 %v303
    %v323 = vunpack.c.l.b16 %v304
    %v324 = vunpack.c.l.b16 %v305
    %v325 = vunpack.c.l.b16 %v306
    %v326 = vunpack.c.l.b16 %v307
    %v327 = vunpack.c.l.b16 %v308
    %v328 = vpack.c.b16 %v321, %v320
    %v329 = vpack.c.b16 %v323, %v322
    %v330 = vpack.c.b16 %v325, %v324
    %v331 = vpack.c.b16 %v327, %v326
    %337 = vrot.lane.b32.xlu0 %v201, 96
    %v338 = vpop.permute.xlu0 %337
    %v341 = vsel %vm235, %v311, 0
    %343 = vmatprep.subr.bf16.mxu0 0
    %344 = vmatpush1.bf16.msra.mxu0 0
    %345 = vmatprep.subr.bf16.mxu0 0
    %346 = vmatpush1.bf16.msra.mxu0 0
    %347 = vmatprep.subr.bf16.mxu0 0
    %348 = vmatpush1.bf16.msra.mxu0 0
    %349 = vmatprep.subr.bf16.mxu0 0
    %350 = vmatpush1.bf16.msra.mxu0 0
    %351 = vmatprep.subr.bf16.mxu0 0
    %352 = vmatpush1.bf16.msra.mxu0 %v331
    %353 = vmatprep.subr.bf16.mxu0 0
    %354 = vmatpush1.bf16.msra.mxu0 %v330
    %355 = vmatprep.subr.bf16.mxu0 0
    %356 = vmatpush1.bf16.msra.mxu0 %v329
    %357 = vmatprep.subr.bf16.mxu0 0
    %358 = vmatpush1.bf16.msra.mxu0 %v328
    %359 = vmatprep.subr.bf16.mxu0 0
    %360 = vmatpush2.bf16.msra.mxu0 0
    %361 = vmatprep.subr.bf16.mxu0 0
    %362 = vmatpush2.bf16.msra.mxu0 0
    %363 = vmatprep.subr.bf16.mxu0 0
    %364 = vmatpush2.bf16.msra.mxu0 0
    %365 = vmatprep.subr.bf16.mxu0 0
    %366 = vmatpush2.bf16.msra.mxu0 0
    %367 = vmatprep.subr.bf16.mxu0 0
    %368 = vmatpush2.bf16.msra.mxu0 0
    %369 = vmatprep.subr.bf16.mxu0 0
    %370 = vmatpush2.bf16.msra.mxu0 0
    %371 = vmatprep.subr.bf16.mxu0 0
    %372 = vmatpush2.bf16.msra.mxu0 0
    %373 = vmatprep.subr.bf16.mxu0 0
    %374 = vmatpush2.bf16.msra.mxu0 0
    %375 = vmatprep.mubr.bf16.mxu0 0
    %376 = vmatmul.mubr.bf16.gmra.mxu0 %v341
    %v377 = vpop.f32.mrf.mxu0
    %v378 = vadd.f32 %v338, %v377
    %v379 = vpop.f32.mrf.mxu0
    %v380 = vpop.f32.mrf.mxu0
    %v381 = vadd.f32 %v338, %v380
    %v382 = vpop.f32.mrf.mxu0
    %383 = vdwg.mxu0
    %v384 = vpack.c.bf16 %v381, %v378
    %v385 = vld [vmem:[#allocation2 + $0x20] sm:$0xff]
    %v386 = vld [vmem:[#allocation2 + $0x28] sm:$0xff]
    %v387 = vld [vmem:[#allocation2 + $0x30] sm:$0xff]
    %v388 = vld [vmem:[#allocation2 + $0x38] sm:$0xff]
    %s389 = scalar_lea.vmem [#allocation6], 1
    %v390 = vld [vmem:[%s389] ss:$8 sm:$0x3]
    %v392 = vlaneseq
    %v393 = vshrl.u32 %v392, 7
    %v394 = vsub.s32 0, %v393
    %v395 = vrot.slane %v390, %v394
    %v396 = vlaneseq
    %v397 = vshrl.u32 %v396, 7
    %v398 = vsub.s32 1, %v397
    %v399 = vrot.slane %v390, %v398
    %v406 = vunpack.c.l.b16 %v385
    %v407 = vunpack.c.h.b16 %v385
    %v408 = vunpack.c.l.b16 %v386
    %v409 = vunpack.c.h.b16 %v386
    %v410 = vunpack.c.l.b16 %v387
    %v411 = vunpack.c.h.b16 %v387
    %v412 = vunpack.c.l.b16 %v388
    %v413 = vunpack.c.h.b16 %v388
    %v414 = vpack.c.b16 %v408, %v406
    %v415 = vpack.c.b16 %v409, %v407
    %v416 = vpack.c.b16 %v412, %v410
    %v417 = vpack.c.b16 %v413, %v411
    %v423 = vsel %vm102, %v384, 0
    %425 = vmatprep.subr.bf16.mxu0 0
    %426 = vmatpush1.bf16.msra.mxu0 0
    %427 = vmatprep.subr.bf16.mxu0 0
    %428 = vmatpush1.bf16.msra.mxu0 0
    %429 = vmatprep.subr.bf16.mxu0 0
    %430 = vmatpush1.bf16.msra.mxu0 0
    %431 = vmatprep.subr.bf16.mxu0 0
    %432 = vmatpush1.bf16.msra.mxu0 0
    %433 = vmatprep.subr.bf16.mxu0 0
    %434 = vmatpush1.bf16.msra.mxu0 0
    %435 = vmatprep.subr.bf16.mxu0 0
    %436 = vmatpush1.bf16.msra.mxu0 0
    %437 = vmatprep.subr.bf16.mxu0 %v417
    %438 = vmatpush1.bf16.msra.mxu0 %v416
    %439 = vmatprep.subr.bf16.mxu0 %v415
    %440 = vmatpush1.bf16.msra.mxu0 %v414
    %441 = vmatprep.subr.bf16.mxu0 0
    %442 = vmatpush2.bf16.msra.mxu0 0
    %443 = vmatprep.subr.bf16.mxu0 0
    %444 = vmatpush2.bf16.msra.mxu0 0
    %445 = vmatprep.subr.bf16.mxu0 0
    %446 = vmatpush2.bf16.msra.mxu0 0
    %447 = vmatprep.subr.bf16.mxu0 0
    %448 = vmatpush2.bf16.msra.mxu0 0
    %449 = vmatprep.subr.bf16.mxu0 0
    %450 = vmatpush2.bf16.msra.mxu0 0
    %451 = vmatprep.subr.bf16.mxu0 0
    %452 = vmatpush2.bf16.msra.mxu0 0
    %453 = vmatprep.subr.bf16.mxu0 0
    %454 = vmatpush2.bf16.msra.mxu0 0
    %455 = vmatprep.subr.bf16.mxu0 0
    %456 = vmatpush2.bf16.msra.mxu0 0
    %457 = vmatprep.mubr.bf16.mxu0 0
    %458 = vmatmul.mubr.bf16.gmra.mxu0 %v423
    %v459 = vpop.f32.mrf.mxu0
    %v460 = vadd.f32 %v395, %v459
    %v461 = vpop.f32.mrf.mxu0
    %v462 = vadd.f32 %v399, %v461
    %v463 = vpop.f32.mrf.mxu0
    %v464 = vadd.f32 %v395, %v463
    %v465 = vpop.f32.mrf.mxu0
    %v466 = vadd.f32 %v399, %v465
    %467 = vdwg.mxu0
    %v468 = vsub.f32 0.0, %v460
    %v469 = vsub.f32 0.0, %v462
    %v470 = vsub.f32 0.0, %v464
    %v471 = vsub.f32 0.0, %v466
    %v472 = vmul.f32 %v468, 1.442695
    %v473 = vpow.pop %v472
    %v474 = vmul.f32 %v469, 1.442695
    %v475 = vpow.pop %v474
    %v476 = vmul.f32 %v470, 1.442695
    %v477 = vpow.pop %v476
    %v478 = vmul.f32 %v471, 1.442695
    %v479 = vpow.pop %v478
    %v480 = vadd.f32 %v473, 1.0
    %v481 = vadd.f32 %v475, 1.0
    %v482 = vadd.f32 %v477, 1.0
    %v483 = vadd.f32 %v479, 1.0
    %v484 = vrcp.pop %v480
    %v485 = vmul.f32 1.0, %v484
    %v486 = vrcp.pop %v481
    %v487 = vmul.f32 1.0, %v486
    %v488 = vrcp.pop %v482
    %v489 = vmul.f32 1.0, %v488
    %v490 = vrcp.pop %v483
    %v491 = vmul.f32 1.0, %v490
    %v492 = vld [vmem:[#allocation2 + $0x40] sm:$0xff]
    %v493 = vld [vmem:[#allocation2 + $0x48] sm:$0xff]
    %v494 = vld [vmem:[#allocation2 + $0x50] sm:$0xff]
    %v495 = vld [vmem:[#allocation2 + $0x58] sm:$0xff]
    %v500 = vunpack.c.l.b16 %v492
    %v501 = vunpack.c.h.b16 %v492
    %v502 = vunpack.c.l.b16 %v493
    %v503 = vunpack.c.h.b16 %v493
    %v504 = vunpack.c.l.b16 %v494
    %v505 = vunpack.c.h.b16 %v494
    %v506 = vunpack.c.l.b16 %v495
    %v507 = vunpack.c.h.b16 %v495
    %v508 = vpack.c.b16 %v502, %v500
    %v509 = vpack.c.b16 %v503, %v501
    %v510 = vpack.c.b16 %v506, %v504
    %v511 = vpack.c.b16 %v507, %v505
    %516 = vmatprep.subr.bf16.mxu0 0
    %517 = vmatpush1.bf16.msra.mxu0 0
    %518 = vmatprep.subr.bf16.mxu0 0
    %519 = vmatpush1.bf16.msra.mxu0 0
    %520 = vmatprep.subr.bf16.mxu0 0
    %521 = vmatpush1.bf16.msra.mxu0 0
    %522 = vmatprep.subr.bf16.mxu0 0
    %523 = vmatpush1.bf16.msra.mxu0 0
    %524 = vmatprep.subr.bf16.mxu0 0
    %525 = vmatpush1.bf16.msra.mxu0 0
    %526 = vmatprep.subr.bf16.mxu0 0
    %527 = vmatpush1.bf16.msra.mxu0 0
    %528 = vmatprep.subr.bf16.mxu0 %v511
    %529 = vmatpush1.bf16.msra.mxu0 %v510
    %530 = vmatprep.subr.bf16.mxu0 %v509
    %531 = vmatpush1.bf16.msra.mxu0 %v508
    %532 = vmatprep.subr.bf16.mxu0 0
    %533 = vmatpush2.bf16.msra.mxu0 0
    %534 = vmatprep.subr.bf16.mxu0 0
    %535 = vmatpush2.bf16.msra.mxu0 0
    %536 = vmatprep.subr.bf16.mxu0 0
    %537 = vmatpush2.bf16.msra.mxu0 0
    %538 = vmatprep.subr.bf16.mxu0 0
    %539 = vmatpush2.bf16.msra.mxu0 0
    %540 = vmatprep.subr.bf16.mxu0 0
    %541 = vmatpush2.bf16.msra.mxu0 0
    %542 = vmatprep.subr.bf16.mxu0 0
    %543 = vmatpush2.bf16.msra.mxu0 0
    %544 = vmatprep.subr.bf16.mxu0 0
    %545 = vmatpush2.bf16.msra.mxu0 0
    %546 = vmatprep.subr.bf16.mxu0 0
    %547 = vmatpush2.bf16.msra.mxu0 0
    %548 = vmatprep.mubr.bf16.mxu0 0
    %549 = vmatmul.mubr.bf16.gmra.mxu0 %v423
    %v550 = vpop.f32.mrf.mxu0
    %v551 = vadd.f32 0.0, %v550
    %v552 = vpop.f32.mrf.mxu0
    %v553 = vadd.f32 0.0, %v552
    %v554 = vpop.f32.mrf.mxu0
    %v555 = vadd.f32 0.0, %v554
    %v556 = vpop.f32.mrf.mxu0
    %v557 = vadd.f32 0.0, %v556
    %558 = vdwg.mxu0
    %v559 = vpack.c.bf16 %v299, %v298
    %v560 = vld [vmem:[#allocation2 + $0x60] sm:$0xff]
    %v561 = vld [vmem:[#allocation2 + $0x68] sm:$0xff]
    %v562 = vld [vmem:[#allocation2 + $0x70] sm:$0xff]
    %v563 = vld [vmem:[#allocation2 + $0x78] sm:$0xff]
    %s564 = scalar_lea.vmem [#allocation6], 2
    %v565 = vld [vmem:[%s564] ss:$8 sm:$0x3]
    %v567 = vlaneseq
    %v568 = vshrl.u32 %v567, 7
    %v569 = vsub.s32 0, %v568
    %v570 = vrot.slane %v565, %v569
    %v571 = vlaneseq
    %v572 = vshrl.u32 %v571, 7
    %v573 = vsub.s32 1, %v572
    %v574 = vrot.slane %v565, %v573
    %v581 = vunpack.c.l.b16 %v560
    %v582 = vunpack.c.h.b16 %v560
    %v583 = vunpack.c.l.b16 %v561
    %v584 = vunpack.c.h.b16 %v561
    %v585 = vunpack.c.l.b16 %v562
    %v586 = vunpack.c.h.b16 %v562
    %v587 = vunpack.c.l.b16 %v563
    %v588 = vunpack.c.h.b16 %v563
    %v589 = vpack.c.b16 %v583, %v581
    %v590 = vpack.c.b16 %v584, %v582
    %v591 = vpack.c.b16 %v587, %v585
    %v592 = vpack.c.b16 %v588, %v586
    %v598 = vsel %vm102, %v559, 0
    %600 = vmatprep.subr.bf16.mxu0 0
    %601 = vmatpush1.bf16.msra.mxu0 0
    %602 = vmatprep.subr.bf16.mxu0 0
    %603 = vmatpush1.bf16.msra.mxu0 0
    %604 = vmatprep.subr.bf16.mxu0 0
    %605 = vmatpush1.bf16.msra.mxu0 0
    %606 = vmatprep.subr.bf16.mxu0 0
    %607 = vmatpush1.bf16.msra.mxu0 0
    %608 = vmatprep.subr.bf16.mxu0 0
    %609 = vmatpush1.bf16.msra.mxu0 0
    %610 = vmatprep.subr.bf16.mxu0 0
    %611 = vmatpush1.bf16.msra.mxu0 0
    %612 = vmatprep.subr.bf16.mxu0 %v592
    %613 = vmatpush1.bf16.msra.mxu0 %v591
    %614 = vmatprep.subr.bf16.mxu0 %v590
    %615 = vmatpush1.bf16.msra.mxu0 %v589
    %616 = vmatprep.subr.bf16.mxu0 0
    %617 = vmatpush2.bf16.msra.mxu0 0
    %618 = vmatprep.subr.bf16.mxu0 0
    %619 = vmatpush2.bf16.msra.mxu0 0
    %620 = vmatprep.subr.bf16.mxu0 0
    %621 = vmatpush2.bf16.msra.mxu0 0
    %622 = vmatprep.subr.bf16.mxu0 0
    %623 = vmatpush2.bf16.msra.mxu0 0
    %624 = vmatprep.subr.bf16.mxu0 0
    %625 = vmatpush2.bf16.msra.mxu0 0
    %626 = vmatprep.subr.bf16.mxu0 0
    %627 = vmatpush2.bf16.msra.mxu0 0
    %628 = vmatprep.subr.bf16.mxu0 0
    %629 = vmatpush2.bf16.msra.mxu0 0
    %630 = vmatprep.subr.bf16.mxu0 0
    %631 = vmatpush2.bf16.msra.mxu0 0
    %632 = vmatprep.mubr.bf16.mxu0 0
    %633 = vmatmul.mubr.bf16.gmra.mxu0 %v598
    %v634 = vpop.f32.mrf.mxu0
    %v635 = vadd.f32 %v570, %v634
    %v636 = vpop.f32.mrf.mxu0
    %v637 = vadd.f32 %v574, %v636
    %v638 = vpop.f32.mrf.mxu0
    %v639 = vadd.f32 %v570, %v638
    %v640 = vpop.f32.mrf.mxu0
    %v641 = vadd.f32 %v574, %v640
    %642 = vdwg.mxu0
    %v643 = vmul.f32 %v485, %v551
    %v644 = vmul.f32 %v487, %v553
    %v645 = vmul.f32 %v489, %v555
    %v646 = vmul.f32 %v491, %v557
    %v647 = vadd.f32 %v635, %v643
    %v648 = vadd.f32 %v637, %v644
    %v649 = vadd.f32 %v639, %v645
    %v650 = vadd.f32 %v641, %v646
    %v651 = vmul.f32 %v647, 0.5
    %v652 = vmul.f32 %v648, 0.5
    %v653 = vmul.f32 %v649, 0.5
    %v654 = vmul.f32 %v650, 0.5
    %v655 = vmul.f32 %v647, 0.044715
    %v656 = vmul.f32 %v648, 0.044715
    %v657 = vmul.f32 %v649, 0.044715
    %v658 = vmul.f32 %v650, 0.044715
    %v659 = vmul.f32 %v655, %v647
    %v660 = vmul.f32 %v656, %v648
    %v661 = vmul.f32 %v657, %v649
    %v662 = vmul.f32 %v658, %v650
    %v663 = vmul.f32 %v659, %v647
    %v664 = vmul.f32 %v660, %v648
    %v665 = vmul.f32 %v661, %v649
    %v666 = vmul.f32 %v662, %v650
    %v667 = vadd.f32 %v647, %v663
    %v668 = vadd.f32 %v648, %v664
    %v669 = vadd.f32 %v649, %v665
    %v670 = vadd.f32 %v650, %v666
    %v671 = vmul.f32 %v667, 0.7978846
    %v672 = vmul.f32 %v668, 0.7978846
    %v673 = vmul.f32 %v669, 0.7978846
    %v674 = vmul.f32 %v670, 0.7978846
    %v675 = vtanh.pop %v671
    %v676 = vtanh.pop %v672
    %v677 = vtanh.pop %v673
    %v678 = vtanh.pop %v674
    %v679 = vadd.f32 %v675, 1.0
    %v680 = vadd.f32 %v676, 1.0
    %v681 = vadd.f32 %v677, 1.0
    %v682 = vadd.f32 %v678, 1.0
    %v683 = vmul.f32 %v651, %v679
    %v684 = vmul.f32 %v652, %v680
    %v685 = vmul.f32 %v653, %v681
    %v686 = vmul.f32 %v654, %v682
    %689 = vrot.lane.b32.xlu0 %v637, 64
    %v690 = vpop.permute.xlu0 %689
    %691 = vrot.lane.b32.xlu0 %v641, 64
    %v692 = vpop.permute.xlu0 %691
    %v695 = vadd.f32 %v143, %v690
    %v696 = vadd.f32 %v147, %v692
    %699 = vrot.lane.b32.xlu0 %v462, 64
    %v700 = vpop.permute.xlu0 %699
    %701 = vrot.lane.b32.xlu0 %v466, 64
    %v702 = vpop.permute.xlu0 %701
    %v705 = vadd.f32 %v695, %v700
    %v706 = vadd.f32 %v696, %v702
    %v707 = vmul.f32 %v705, 0.5
    %v708 = vmul.f32 %v706, 0.5
    %v709 = vmul.f32 %v705, 0.044715
    %v710 = vmul.f32 %v706, 0.044715
    %v711 = vmul.f32 %v709, %v705
    %v712 = vmul.f32 %v710, %v706
    %v713 = vmul.f32 %v711, %v705
    %v714 = vmul.f32 %v712, %v706
    %v715 = vadd.f32 %v705, %v713
    %v716 = vadd.f32 %v706, %v714
    %v717 = vmul.f32 %v715, 0.7978846
    %v718 = vmul.f32 %v716, 0.7978846
    %v719 = vtanh.pop %v717
    %v720 = vtanh.pop %v718
    %v721 = vadd.f32 %v719, 1.0
    %v722 = vadd.f32 %v720, 1.0
    %v723 = vmul.f32 %v707, %v721
    %v724 = vmul.f32 %v708, %v722
    %v725 = vpack.c.bf16 %v724, %v723
    %v726 = vld [vmem:[#allocation4 + $0x40] sm:$0xf]
    %v727 = vld [vmem:[#allocation4 + $0x44] sm:$0xf]
    %v728 = vld [vmem:[#allocation4 + $0x48] sm:$0xf]
    %v729 = vld [vmem:[#allocation4 + $0x4c] sm:$0xf]
    %v730 = vld [vmem:[#allocation4 + $0x50] sm:$0xf]
    %v731 = vld [vmem:[#allocation4 + $0x54] sm:$0xf]
    %v732 = vld [vmem:[#allocation4 + $0x58] sm:$0xf]
    %v733 = vld [vmem:[#allocation4 + $0x5c] sm:$0xf]
    %v742 = vunpack.c.l.b16 %v726
    %v743 = vunpack.c.l.b16 %v727
    %v744 = vunpack.c.l.b16 %v728
    %v745 = vunpack.c.l.b16 %v729
    %v746 = vunpack.c.l.b16 %v730
    %v747 = vunpack.c.l.b16 %v731
    %v748 = vunpack.c.l.b16 %v732
    %v749 = vunpack.c.l.b16 %v733
    %v750 = vpack.c.b16 %v743, %v742
    %v751 = vpack.c.b16 %v745, %v744
    %v752 = vpack.c.b16 %v747, %v746
    %v753 = vpack.c.b16 %v749, %v748
    %758 = vrot.lane.b32.xlu0 %v201, 64
    %v759 = vpop.permute.xlu0 %758
    %v762 = vsel %vm235, %v725, 0
    %764 = vmatprep.subr.bf16.mxu0 0
    %765 = vmatpush1.bf16.msra.mxu0 0
    %766 = vmatprep.subr.bf16.mxu0 0
    %767 = vmatpush1.bf16.msra.mxu0 0
    %768 = vmatprep.subr.bf16.mxu0 0
    %769 = vmatpush1.bf16.msra.mxu0 0
    %770 = vmatprep.subr.bf16.mxu0 0
    %771 = vmatpush1.bf16.msra.mxu0 0
    %772 = vmatprep.subr.bf16.mxu0 0
    %773 = vmatpush1.bf16.msra.mxu0 %v753
    %774 = vmatprep.subr.bf16.mxu0 0
    %775 = vmatpush1.bf16.msra.mxu0 %v752
    %776 = vmatprep.subr.bf16.mxu0 0
    %777 = vmatpush1.bf16.msra.mxu0 %v751
    %778 = vmatprep.subr.bf16.mxu0 0
    %779 = vmatpush1.bf16.msra.mxu0 %v750
    %780 = vmatprep.subr.bf16.mxu0 0
    %781 = vmatpush2.bf16.msra.mxu0 0
    %782 = vmatprep.subr.bf16.mxu0 0
    %783 = vmatpush2.bf16.msra.mxu0 0
    %784 = vmatprep.subr.bf16.mxu0 0
    %785 = vmatpush2.bf16.msra.mxu0 0
    %786 = vmatprep.subr.bf16.mxu0 0
    %787 = vmatpush2.bf16.msra.mxu0 0
    %788 = vmatprep.subr.bf16.mxu0 0
    %789 = vmatpush2.bf16.msra.mxu0 0
    %790 = vmatprep.subr.bf16.mxu0 0
    %791 = vmatpush2.bf16.msra.mxu0 0
    %792 = vmatprep.subr.bf16.mxu0 0
    %793 = vmatpush2.bf16.msra.mxu0 0
    %794 = vmatprep.subr.bf16.mxu0 0
    %795 = vmatpush2.bf16.msra.mxu0 0
    %796 = vmatprep.mubr.bf16.mxu0 0
    %797 = vmatmul.mubr.bf16.gmra.mxu0 %v762
    %v798 = vpop.f32.mrf.mxu0
    %v799 = vadd.f32 %v759, %v798
    %v800 = vpop.f32.mrf.mxu0
    %v801 = vpop.f32.mrf.mxu0
    %v802 = vadd.f32 %v759, %v801
    %v803 = vpop.f32.mrf.mxu0
    %804 = vdwg.mxu0
    %v805 = vmul.f32 %v799, 0.5
    %v806 = vmul.f32 %v802, 0.5
    %v807 = vmul.f32 %v799, 0.044715
    %v808 = vmul.f32 %v802, 0.044715
    %v809 = vmul.f32 %v807, %v799
    %v810 = vmul.f32 %v808, %v802
    %v811 = vmul.f32 %v809, %v799
    %v812 = vmul.f32 %v810, %v802
    %v813 = vadd.f32 %v799, %v811
    %v814 = vadd.f32 %v802, %v812
    %v815 = vmul.f32 %v813, 0.7978846
    %v816 = vmul.f32 %v814, 0.7978846
    %v817 = vtanh.pop %v815
    %v818 = vtanh.pop %v816
    %v819 = vadd.f32 %v817, 1.0
    %v820 = vadd.f32 %v818, 1.0
    %v821 = vmul.f32 %v805, %v819
    %v822 = vmul.f32 %v806, %v820
    %v823 = vpack.c.bf16 %v685, %v683
    %v824 = vpack.c.bf16 %v686, %v684
    %v825 = vld [vmem:[#allocation4 + $0x60] sm:$0xf]
    %v826 = vld [vmem:[#allocation4 + $0x64] sm:$0xf]
    %v827 = vld [vmem:[#allocation4 + $0x68] sm:$0xf]
    %v828 = vld [vmem:[#allocation4 + $0x6c] sm:$0xf]
    %v829 = vld [vmem:[#allocation4 + $0x70] sm:$0xf]
    %v830 = vld [vmem:[#allocation4 + $0x74] sm:$0xf]
    %v831 = vld [vmem:[#allocation4 + $0x78] sm:$0xf]
    %v832 = vld [vmem:[#allocation4 + $0x7c] sm:$0xf]
    %v833 = vld [vmem:[#allocation4 + $0x80] sm:$0xf]
    %v834 = vld [vmem:[#allocation4 + $0x84] sm:$0xf]
    %v835 = vld [vmem:[#allocation4 + $0x88] sm:$0xf]
    %v836 = vld [vmem:[#allocation4 + $0x8c] sm:$0xf]
    %v837 = vld [vmem:[#allocation4 + $0x90] sm:$0xf]
    %v838 = vld [vmem:[#allocation4 + $0x94] sm:$0xf]
    %v839 = vld [vmem:[#allocation4 + $0x98] sm:$0xf]
    %v840 = vld [vmem:[#allocation4 + $0x9c] sm:$0xf]
    %v841 = vld [vmem:[#allocation4 + $0xa0] sm:$0xf]
    %v842 = vld [vmem:[#allocation4 + $0xa4] sm:$0xf]
    %v843 = vld [vmem:[#allocation4 + $0xa8] sm:$0xf]
    %v844 = vld [vmem:[#allocation4 + $0xac] sm:$0xf]
    %v845 = vld [vmem:[#allocation4 + $0xb0] sm:$0xf]
    %v846 = vld [vmem:[#allocation4 + $0xb4] sm:$0xf]
    %v847 = vld [vmem:[#allocation4 + $0xb8] sm:$0xf]
    %v848 = vld [vmem:[#allocation4 + $0xbc] sm:$0xf]
    %v849 = vpack.c.bf16 %v822, %v821
    %v850 = vld [vmem:[#allocation4 + $0xc0] sm:$0xf]
    %v851 = vld [vmem:[#allocation4 + $0xc4] sm:$0xf]
    %v852 = vld [vmem:[#allocation4 + $0xc8] sm:$0xf]
    %v853 = vld [vmem:[#allocation4 + $0xcc] sm:$0xf]
    %v858 = vunpack.c.l.b16 %v850
    %v859 = vunpack.c.l.b16 %v851
    %v860 = vunpack.c.l.b16 %v852
    %v861 = vunpack.c.l.b16 %v853
    %v862 = vpack.c.b16 %v859, %v858
    %v863 = vpack.c.b16 %v861, %v860
    %v867 = vsel %vm102, %v849, 0
    %869 = vmatprep.subr.bf16.mxu0 0
    %870 = vmatpush1.bf16.msra.mxu0 0
    %871 = vmatprep.subr.bf16.mxu0 0
    %872 = vmatpush1.bf16.msra.mxu0 0
    %873 = vmatprep.subr.bf16.mxu0 0
    %874 = vmatpush1.bf16.msra.mxu0 0
    %875 = vmatprep.subr.bf16.mxu0 0
    %876 = vmatpush1.bf16.msra.mxu0 0
    %877 = vmatprep.subr.bf16.mxu0 0
    %878 = vmatpush1.bf16.msra.mxu0 0
    %879 = vmatprep.subr.bf16.mxu0 0
    %880 = vmatpush1.bf16.msra.mxu0 0
    %881 = vmatprep.subr.bf16.mxu0 0
    %882 = vmatpush1.bf16.msra.mxu0 %v863
    %883 = vmatprep.subr.bf16.mxu0 0
    %884 = vmatpush1.bf16.msra.mxu0 %v862
    %885 = vmatprep.subr.bf16.mxu0 0
    %886 = vmatpush2.bf16.msra.mxu0 0
    %887 = vmatprep.subr.bf16.mxu0 0
    %888 = vmatpush2.bf16.msra.mxu0 0
    %889 = vmatprep.subr.bf16.mxu0 0
    %890 = vmatpush2.bf16.msra.mxu0 0
    %891 = vmatprep.subr.bf16.mxu0 0
    %892 = vmatpush2.bf16.msra.mxu0 0
    %893 = vmatprep.subr.bf16.mxu0 0
    %894 = vmatpush2.bf16.msra.mxu0 0
    %895 = vmatprep.subr.bf16.mxu0 0
    %896 = vmatpush2.bf16.msra.mxu0 0
    %897 = vmatprep.subr.bf16.mxu0 0
    %898 = vmatpush2.bf16.msra.mxu0 0
    %899 = vmatprep.subr.bf16.mxu0 0
    %900 = vmatpush2.bf16.msra.mxu0 0
    %901 = vmatprep.mubr.bf16.mxu0 0
    %902 = vmatmul.mubr.bf16.gmra.mxu0 %v867
    %v903 = vpop.f32.mrf.mxu0
    %v904 = vadd.f32 0.0, %v903
    %v905 = vpop.f32.mrf.mxu0
    %v906 = vpop.f32.mrf.mxu0
    %v907 = vadd.f32 0.0, %v906
    %v908 = vpop.f32.mrf.mxu0
    %909 = vdwg.mxu0
    %v934 = vunpack.c.l.b16 %v825
    %v935 = vunpack.c.l.b16 %v826
    %v936 = vunpack.c.l.b16 %v827
    %v937 = vunpack.c.l.b16 %v828
    %v938 = vunpack.c.l.b16 %v829
    %v939 = vunpack.c.l.b16 %v830
    %v940 = vunpack.c.l.b16 %v831
    %v941 = vunpack.c.l.b16 %v832
    %v942 = vunpack.c.l.b16 %v833
    %v943 = vunpack.c.l.b16 %v834
    %v944 = vunpack.c.l.b16 %v835
    %v945 = vunpack.c.l.b16 %v836
    %v946 = vunpack.c.l.b16 %v837
    %v947 = vunpack.c.l.b16 %v838
    %v948 = vunpack.c.l.b16 %v839
    %v949 = vunpack.c.l.b16 %v840
    %v950 = vunpack.c.l.b16 %v841
    %v951 = vunpack.c.l.b16 %v842
    %v952 = vunpack.c.l.b16 %v843
    %v953 = vunpack.c.l.b16 %v844
    %v954 = vunpack.c.l.b16 %v845
    %v955 = vunpack.c.l.b16 %v846
    %v956 = vunpack.c.l.b16 %v847
    %v957 = vunpack.c.l.b16 %v848
    %v958 = vpack.c.b16 %v935, %v934
    %v959 = vpack.c.b16 %v937, %v936
    %v960 = vpack.c.b16 %v939, %v938
    %v961 = vpack.c.b16 %v941, %v940
    %v962 = vpack.c.b16 %v943, %v942
    %v963 = vpack.c.b16 %v945, %v944
    %v964 = vpack.c.b16 %v947, %v946
    %v965 = vpack.c.b16 %v949, %v948
    %v966 = vpack.c.b16 %v951, %v950
    %v967 = vpack.c.b16 %v953, %v952
    %v968 = vpack.c.b16 %v955, %v954
    %v969 = vpack.c.b16 %v957, %v956
    %v983 = vsel %vm235, %v824, 0
    %985 = vmatprep.subr.bf16.mxu0 0
    %986 = vmatpush1.bf16.msra.mxu0 %v965
    %987 = vmatprep.subr.bf16.mxu0 0
    %988 = vmatpush1.bf16.msra.mxu0 %v964
    %989 = vmatprep.subr.bf16.mxu0 0
    %990 = vmatpush1.bf16.msra.mxu0 %v963
    %991 = vmatprep.subr.bf16.mxu0 0
    %992 = vmatpush1.bf16.msra.mxu0 %v962
    %993 = vmatprep.subr.bf16.mxu0 0
    %994 = vmatpush1.bf16.msra.mxu0 %v961
    %995 = vmatprep.subr.bf16.mxu0 0
    %996 = vmatpush1.bf16.msra.mxu0 %v960
    %997 = vmatprep.subr.bf16.mxu0 0
    %998 = vmatpush1.bf16.msra.mxu0 %v959
    %999 = vmatprep.subr.bf16.mxu0 0
    %1000 = vmatpush1.bf16.msra.mxu0 %v958
    %1001 = vmatprep.subr.bf16.mxu0 0
    %1002 = vmatpush2.bf16.msra.mxu0 0
    %1003 = vmatprep.subr.bf16.mxu0 0
    %1004 = vmatpush2.bf16.msra.mxu0 0
    %1005 = vmatprep.subr.bf16.mxu0 0
    %1006 = vmatpush2.bf16.msra.mxu0 0
    %1007 = vmatprep.subr.bf16.mxu0 0
    %1008 = vmatpush2.bf16.msra.mxu0 0
    %1009 = vmatprep.subr.bf16.mxu0 0
    %1010 = vmatpush2.bf16.msra.mxu0 %v969
    %1011 = vmatprep.subr.bf16.mxu0 0
    %1012 = vmatpush2.bf16.msra.mxu0 %v968
    %1013 = vmatprep.subr.bf16.mxu0 0
    %1014 = vmatpush2.bf16.msra.mxu0 %v967
    %1015 = vmatprep.subr.bf16.mxu0 0
    %1016 = vmatpush2.bf16.msra.mxu0 %v966
    %1017 = vmatprep.mubr.bf16.mxu0 %v983
    %1018 = vmatmul.mubr.bf16.gmra.mxu0 %v823
    %v1019 = vpop.f32.mrf.mxu0
    %v1020 = vadd.f32 %v904, %v1019
    %v1021 = vpop.f32.mrf.mxu0
    %v1022 = vpop.f32.mrf.mxu0
    %v1023 = vadd.f32 %v907, %v1022
    %v1024 = vpop.f32.mrf.mxu0
    %1025 = vdwg.mxu0
    %v1026 = vld [vmem:[#allocation6 + $0x12] ss:$0 sm:$0xff]
    %v1027 = vadd.f32 %v1020, %v1026
    %v1028 = vadd.f32 %v1023, %v1026
    %v1029 = vmax.f32 %v1027, 0.0
    %v1030 = vmax.f32 %v1028, 0.0
    %v1031 = vand.u32 2147483647, %v1027
    %v1032 = vand.u32 2147483647, %v1028
    %v1033 = vsub.f32 0.0, %v1031
    %v1034 = vsub.f32 0.0, %v1032
    %v1035 = vmul.f32 %v1033, 1.442695
    %v1036 = vpow.pop %v1035
    %v1037 = vmul.f32 %v1034, 1.442695
    %v1038 = vpow.pop %v1037
    %v1039 = vadd.f32 %v1036, 1.0
    %v1040 = vadd.f32 %v1038, 1.0
    %v1041 = vlog2.pop %v1039
    %v1042 = vmul.f32 %v1041, 0.6931472
    %v1043 = vlog2.pop %v1040
    %v1044 = vmul.f32 %v1043, 0.6931472
    %v1045 = vadd.f32 %v1029, %v1042
    %v1046 = vadd.f32 %v1030, %v1044
    %1047 = vst [vmem:[%s4] sm:$0xff] %v1045
    %1048 = vst [vmem:[%s4 + $0x8] sm:$0xff] %v1046
    // Predicated region
    $region30: #{_forward.1} parent=1 // pred_check
      _
    $region31: #{_forward.1} parent=1 // pred_check_branch
      %1050 = sbr.rel (0) target = $region33
    $region32: #{_forward.1} parent=1 // pred_region
      _
    $region33: #{_forward.1} parent=1 // pred_fallthru
      _
    // Predicated region
    $region34: #{_forward.1} parent=1 // pred_check
      _
    $region35: #{_forward.1} parent=1 // pred_check_branch
      %1052 = sbr.rel (0) target = $region37
    $region36: #{_forward.1} parent=1 // pred_region
      _
    $region37: #{_forward.1} parent=1 // pred_fallthru
      _
    %1053 = vsyncpa [#allocation3], 1
    %1054 = vsyncpa [#allocation5], 1

</llo_original>
